<compile_context>
chip_gen: v5e
topology: v5e:2x2
jax: 0.10.0
libtpu: 0.0.40
codegen_flags: <defaults>
</compile_context>

<pallas_src>
import functools
import itertools

import numpy as np
import jax
import jax.numpy as jnp
from jax.experimental import pallas as pl
from jax.experimental.pallas import tpu as pltpu

# matcher hyper-parameters (deterministic, set in-script)
CLASS_WEIGHT = 2.0
COORD_WEIGHT = 5.0
TEXT_WEIGHT = 0.0   # TODO(synk): linguistic KL cost needs generate_soft_target_sequence (not defined in the reference module)
FOCAL_ALPHA = 0.25
FOCAL_GAMMA = 2.0   # kernel uses explicit squares (gamma == 2), avoiding EUP pow


def _round_up(x, m):
    return ((x + m - 1) // m) * m


def _matcher_cost_kernel(pred_ref, tgt_t_ref, cost_ref, *, n_pts, d):
    # ---- focal class cost on class 0 (tiny: O(TM * P)) ----
    prob = jax.nn.sigmoid(pred_ref[:, :n_pts])                    # (TM, P)
    p = jnp.sum(prob, axis=-1, keepdims=True) * (1.0 / n_pts)     # (TM, 1) mean over ctrl pts
    q = 1.0 - p
    neg = (1.0 - FOCAL_ALPHA) * (p * p) * (-jnp.log(q + 1e-8))
    pos = FOCAL_ALPHA * (q * q) * (-jnp.log(p + 1e-8))
    cost_class = CLASS_WEIGHT * (pos - neg)                       # (TM, 1)

    # ---- L1 cdist accumulated over D: lane-dense (TM, MB) VPU abs+add ----
    # COORD_WEIGHT is already folded into both coordinate inputs (wrapper).
    # Seed the accumulator with the broadcast cost_class via the k=0 add so
    # the epilogue is just the store; per-k ref-column reads keep vreg
    # pressure bounded (no hoisted (TM, D) tile).
    acc = cost_class + jnp.abs(pred_ref[:, n_pts:n_pts + 1] - tgt_t_ref[0:1, :])
    for k in range(1, d):                                         # static unroll, D is small (16-32)
        a = pred_ref[:, n_pts + k:n_pts + k + 1]                  # (TM, 1) column read
        acc = acc + jnp.abs(a - tgt_t_ref[k:k + 1, :])
    cost_ref[...] = acc


def compute_cost_matrix(pred_logits, pred_ctrl_points, tgt_ctrl_points, *, tm=256, mb=128):
    """Glue: slice/reshape/pad/scale in plain JAX, hot path in the Pallas kernel.

    Defaults (TM=256, MB=128) keep the per-step accumulator at 32 vregs and the
    VMEM footprint tiny on every generation (v5e 16 MiB scoped, v7x 64 MiB
    physical); both grid axes are "parallel" for v7x megacore.
    """
    bs, nq, n_pts, n_cls = pred_logits.shape
    N = bs * nq
    M = tgt_ctrl_points.shape[0]
    D = n_pts * 2

    if M == 0:
        # empty-target guard (PyTorch matcher handles this on host too)
        return jnp.zeros((N, 0), jnp.float32)

    # class 0 only (matcher uses [:, 0]); sigmoid is elementwise so slicing first is exact.
    logits0 = pred_logits[..., 0].reshape(N, n_pts).astype(jnp.float32)                   # (N, P)
    # Fold COORD_WEIGHT into the tiny coordinate arrays: |w*a - w*b| = w*|a-b|, w > 0.
    out_pts = (COORD_WEIGHT * pred_ctrl_points.reshape(N, D)).astype(jnp.float32)         # (N, D)
    tgt_t = jnp.transpose(
        (COORD_WEIGHT * tgt_ctrl_points.reshape(M, D)).astype(jnp.float32))               # (D, M)

    # single concatenated input block: [logits | weighted ctrl pts]
    pred = jnp.concatenate([logits0, out_pts], axis=1)                                    # (N, P+D)

    # pad GT axis to a lane-dense multiple of 128 (unmasked vector stores)
    M_pad = _round_up(M, 128)
    MB = min(mb, M_pad)

    # query tile: multiple of 8; shrink so the parallel row axis has >= 2 grid
    # steps when N allows (v7x has 2 TensorCores per chip)
    TM = min(tm, _round_up(N, 8))
    if _round_up(N, TM) // TM < 2 and TM > 8:
        TM = max(8, _round_up((N + 1) // 2, 8))
    N_pad = _round_up(N, TM)

    pred_p = jnp.pad(pred, ((0, N_pad - N), (0, 0)))
    tgt_t_p = jnp.pad(tgt_t, ((0, 0), (0, M_pad - M)))

    grid = (N_pad // TM, M_pad // MB)

    # explicit VMEM budget: double-buffered in/out tiles + generous headroom
    tile_bytes = 4 * (TM * (n_pts + D) + D * MB + TM * MB)
    vmem_limit = int(min(100 * 1024 * 1024, max(4 * 1024 * 1024, 4 * tile_bytes)))

    cost = pl.pallas_call(
        functools.partial(_matcher_cost_kernel, n_pts=n_pts, d=D),
        out_shape=jax.ShapeDtypeStruct((N_pad, M_pad), jnp.float32),
        grid=grid,
        in_specs=[
            pl.BlockSpec((TM, n_pts + D), lambda i, j: (i, 0)),   # [logits | weighted pts] tile
            pl.BlockSpec((D, MB), lambda i, j: (0, j)),           # weighted GT points block
        ],
        out_specs=pl.BlockSpec((TM, MB), lambda i, j: (i, j)),
        compiler_params=pltpu.CompilerParams(
            dimension_semantics=("parallel", "parallel"),
            vmem_limit_bytes=vmem_limit,
        ),
    )(pred_p, tgt_t_p)

    return cost[:N, :M]


def _reference_cost(pred_logits, pred_ctrl_points, tgt_ctrl_points):
    """Pure-JAX reference mirroring the PyTorch forward math."""
    bs, nq, n_pts, n_cls = pred_logits.shape
    N = bs * nq
    p = jax.nn.sigmoid(pred_logits.reshape(N, n_pts, n_cls)).mean(axis=1)   # (N, K)
    neg = (1.0 - FOCAL_ALPHA) * p ** FOCAL_GAMMA * (-jnp.log(1.0 - p + 1e-8))
    pos = FOCAL_ALPHA * (1.0 - p) ** FOCAL_GAMMA * (-jnp.log(p + 1e-8))
    cost_class = pos[:, 0] - neg[:, 0]                                      # (N,)
    out_pts = pred_ctrl_points.reshape(N, -1)
    tgt_pts = tgt_ctrl_points.reshape(tgt_ctrl_points.shape[0], -1)
    cost_kpts = jnp.abs(out_pts[:, None, :] - tgt_pts[None, :, :]).sum(-1)  # (N, M)
    return CLASS_WEIGHT * cost_class[:, None] + COORD_WEIGHT * cost_kpts


def _linear_sum_assignment_bruteforce(cost):
    """Exact minimum-cost assignment for tiny rectangular matrices (host-side).

    TODO(synk): real matcher sizes (nq~100) need scipy.optimize.linear_sum_assignment on host.
    """
    cost = np.asarray(cost)
    n_r, n_c = cost.shape
    if n_r == 0 or n_c == 0:
        return np.empty(0, dtype=np.int64), np.empty(0, dtype=np.int64)
    if n_r >= n_c:
        best_sum, best_rows = None, None
        col_idx = np.arange(n_c)
        for rows in itertools.permutations(range(n_r), n_c):
            s = cost[list(rows), col_idx].sum()
            if best_sum is None or s < best_sum:
                best_sum, best_rows = s, rows
        rows = np.asarray(best_rows, dtype=np.int64)
        cols = col_idx.astype(np.int64)
    else:
        cols, rows = _linear_sum_assignment_bruteforce(cost.T)
    order = np.argsort(rows)
    return rows[order], cols[order]


def hungarian_match(C, bs, nq, sizes):
    C = np.asarray(C).reshape(bs, nq, -1)
    indices = []
    start = 0
    for i, s in enumerate(sizes):
        c_i = C[i, :, start:start + s]
        indices.append(_linear_sum_assignment_bruteforce(c_i))
        start += s
    return [(np.asarray(r, dtype=np.int64), np.asarray(c, dtype=np.int64)) for r, c in indices]


if __name__ == "__main__":
    # small shapes consistent with the matcher's forward
    bs, nq, n_pts, n_cls = 2, 8, 8, 1
    sizes = [2, 3]                       # GT instances per image
    total_gt = sum(sizes)

    key = jax.random.PRNGKey(0)
    k1, k2, k3 = jax.random.split(key, 3)
    pred_logits = jax.random.normal(k1, (bs, nq, n_pts, n_cls), dtype=jnp.float32)
    pred_ctrl_points = jax.random.uniform(k2, (bs, nq, n_pts, 2), dtype=jnp.float32)
    tgt_ctrl_points = jax.random.uniform(k3, (total_gt, n_pts, 2), dtype=jnp.float32)

    # Pallas kernel: fused focal class cost + L1 cdist + weighted sum
    C = compute_cost_matrix(pred_logits, pred_ctrl_points, tgt_ctrl_points)
    C = jax.block_until_ready(C)

    # correctness check against pure-JAX reference
    C_ref = jax.block_until_ready(
        _reference_cost(pred_logits, pred_ctrl_points, tgt_ctrl_points))
    np.testing.assert_allclose(np.asarray(C), np.asarray(C_ref), rtol=1e-5, atol=1e-5)

    # host-side Hungarian assignment per image (like linear_sum_assignment in the module)
    indices = hungarian_match(C, bs, nq, sizes)
    assert len(indices) == bs and all(len(r) == s for (r, _), s in zip(indices, sizes))

    print("KERNEL_OK")
</pallas_src>

<mosaic_0001>
module attributes {stable_mosaic.version = 11 : i64} {
  func.func @_matcher_cost_kernel(%arg0: i32, %arg1: i32, %arg2: memref<8x24xf32, #tpu.memory_space<vmem>>, %arg3: memref<16x128xf32, #tpu.memory_space<vmem>>, %arg4: memref<8x128xf32, #tpu.memory_space<vmem>>) attributes {dimension_semantics = [#tpu.dimension_semantics<parallel>, #tpu.dimension_semantics<parallel>], iteration_bounds = array<i64: 2, 1>, scalar_prefetch = 0 : i64, scratch_operands = 0 : i64, tpu.core_type = #tpu.core_type<tc>, window_params = [{transform_indices = @transform_0, window_bounds = array<i64: 8, 24>}, {transform_indices = @transform_1, window_bounds = array<i64: 16, 128>}, {transform_indices = @transform_2, window_bounds = array<i64: 8, 128>}]} {
    %c0 = arith.constant 0 : index
    %c0_0 = arith.constant 0 : index
    %0 = vector.load %arg2[%c0, %c0_0] : memref<8x24xf32, #tpu.memory_space<vmem>>, vector<8x8xf32>
    %1 = arith.negf %0 : vector<8x8xf32>
    %2 = math.exp %1 : vector<8x8xf32>
    %cst = arith.constant 1.000000e+00 : f32
    %3 = vector.broadcast %cst : f32 to vector<8x8xf32>
    %4 = arith.addf %3, %2 : vector<8x8xf32>
    %5 = arith.divf %3, %4 : vector<8x8xf32>
    %cst_1 = arith.constant dense<0.000000e+00> : vector<8xf32>
    %6 = vector.multi_reduction <add>, %5, %cst_1 [1] : vector<8x8xf32> to vector<8xf32>
    %7 = vector.shape_cast %6 : vector<8xf32> to vector<8x1xf32>
    %cst_2 = arith.constant 1.250000e-01 : f32
    %8 = vector.broadcast %cst_2 : f32 to vector<8x1xf32>
    %9 = arith.mulf %7, %8 : vector<8x1xf32>
    %cst_3 = arith.constant 1.000000e+00 : f32
    %10 = vector.broadcast %cst_3 : f32 to vector<8x1xf32>
    %11 = arith.subf %10, %9 : vector<8x1xf32>
    %12 = arith.mulf %9, %9 : vector<8x1xf32>
    %cst_4 = arith.constant 7.500000e-01 : f32
    %13 = vector.broadcast %cst_4 : f32 to vector<8x1xf32>
    %14 = arith.mulf %13, %12 : vector<8x1xf32>
    %cst_5 = arith.constant 9.99999993E-9 : f32
    %15 = vector.broadcast %cst_5 : f32 to vector<8x1xf32>
    %16 = arith.addf %11, %15 : vector<8x1xf32>
    %17 = math.log %16 : vector<8x1xf32>
    %cst_6 = arith.constant 0.000000e+00 : f32
    %18 = vector.broadcast %cst_6 : f32 to vector<8x1xf32>
    %19 = arith.subf %18, %17 : vector<8x1xf32>
    %20 = arith.mulf %14, %19 : vector<8x1xf32>
    %21 = arith.mulf %11, %11 : vector<8x1xf32>
    %cst_7 = arith.constant 2.500000e-01 : f32
    %22 = vector.broadcast %cst_7 : f32 to vector<8x1xf32>
    %23 = arith.mulf %22, %21 : vector<8x1xf32>
    %cst_8 = arith.constant 9.99999993E-9 : f32
    %24 = vector.broadcast %cst_8 : f32 to vector<8x1xf32>
    %25 = arith.addf %9, %24 : vector<8x1xf32>
    %26 = math.log %25 : vector<8x1xf32>
    %cst_9 = arith.constant 0.000000e+00 : f32
    %27 = vector.broadcast %cst_9 : f32 to vector<8x1xf32>
    %28 = arith.subf %27, %26 : vector<8x1xf32>
    %29 = arith.mulf %23, %28 : vector<8x1xf32>
    %30 = arith.subf %29, %20 : vector<8x1xf32>
    %cst_10 = arith.constant 2.000000e+00 : f32
    %31 = vector.broadcast %cst_10 : f32 to vector<8x1xf32>
    %32 = arith.mulf %31, %30 : vector<8x1xf32>
    %c0_11 = arith.constant 0 : index
    %c8 = arith.constant 8 : index
    %33 = vector.load %arg2[%c0_11, %c8] : memref<8x24xf32, #tpu.memory_space<vmem>>, vector<8x1xf32>
    %c0_12 = arith.constant 0 : index
    %c0_13 = arith.constant 0 : index
    %34 = vector.load %arg3[%c0_12, %c0_13] : memref<16x128xf32, #tpu.memory_space<vmem>>, vector<1x128xf32>
    %35 = vector.broadcast %33 : vector<8x1xf32> to vector<8x128xf32>
    %36 = vector.broadcast %34 : vector<1x128xf32> to vector<8x128xf32>
    %37 = arith.subf %35, %36 : vector<8x128xf32>
    %38 = math.absf %37 : vector<8x128xf32>
    %39 = vector.broadcast %32 : vector<8x1xf32> to vector<8x128xf32>
    %40 = arith.addf %39, %38 : vector<8x128xf32>
    %c0_14 = arith.constant 0 : index
    %c9 = arith.constant 9 : index
    %41 = vector.load %arg2[%c0_14, %c9] : memref<8x24xf32, #tpu.memory_space<vmem>>, vector<8x1xf32>
    %c1 = arith.constant 1 : index
    %c0_15 = arith.constant 0 : index
    %42 = vector.load %arg3[%c1, %c0_15] : memref<16x128xf32, #tpu.memory_space<vmem>>, vector<1x128xf32>
    %43 = vector.broadcast %41 : vector<8x1xf32> to vector<8x128xf32>
    %44 = vector.broadcast %42 : vector<1x128xf32> to vector<8x128xf32>
    %45 = arith.subf %43, %44 : vector<8x128xf32>
    %46 = math.absf %45 : vector<8x128xf32>
    %47 = arith.addf %40, %46 : vector<8x128xf32>
    %c0_16 = arith.constant 0 : index
    %c10 = arith.constant 10 : index
    %48 = vector.load %arg2[%c0_16, %c10] : memref<8x24xf32, #tpu.memory_space<vmem>>, vector<8x1xf32>
    %c2 = arith.constant 2 : index
    %c0_17 = arith.constant 0 : index
    %49 = vector.load %arg3[%c2, %c0_17] : memref<16x128xf32, #tpu.memory_space<vmem>>, vector<1x128xf32>
    %50 = vector.broadcast %48 : vector<8x1xf32> to vector<8x128xf32>
    %51 = vector.broadcast %49 : vector<1x128xf32> to vector<8x128xf32>
    %52 = arith.subf %50, %51 : vector<8x128xf32>
    %53 = math.absf %52 : vector<8x128xf32>
    %54 = arith.addf %47, %53 : vector<8x128xf32>
    %c0_18 = arith.constant 0 : index
    %c11 = arith.constant 11 : index
    %55 = vector.load %arg2[%c0_18, %c11] : memref<8x24xf32, #tpu.memory_space<vmem>>, vector<8x1xf32>
    %c3 = arith.constant 3 : index
    %c0_19 = arith.constant 0 : index
    %56 = vector.load %arg3[%c3, %c0_19] : memref<16x128xf32, #tpu.memory_space<vmem>>, vector<1x128xf32>
    %57 = vector.broadcast %55 : vector<8x1xf32> to vector<8x128xf32>
    %58 = vector.broadcast %56 : vector<1x128xf32> to vector<8x128xf32>
    %59 = arith.subf %57, %58 : vector<8x128xf32>
    %60 = math.absf %59 : vector<8x128xf32>
    %61 = arith.addf %54, %60 : vector<8x128xf32>
    %c0_20 = arith.constant 0 : index
    %c12 = arith.constant 12 : index
    %62 = vector.load %arg2[%c0_20, %c12] : memref<8x24xf32, #tpu.memory_space<vmem>>, vector<8x1xf32>
    %c4 = arith.constant 4 : index
    %c0_21 = arith.constant 0 : index
    %63 = vector.load %arg3[%c4, %c0_21] : memref<16x128xf32, #tpu.memory_space<vmem>>, vector<1x128xf32>
    %64 = vector.broadcast %62 : vector<8x1xf32> to vector<8x128xf32>
    %65 = vector.broadcast %63 : vector<1x128xf32> to vector<8x128xf32>
    %66 = arith.subf %64, %65 : vector<8x128xf32>
    %67 = math.absf %66 : vector<8x128xf32>
    %68 = arith.addf %61, %67 : vector<8x128xf32>
    %c0_22 = arith.constant 0 : index
    %c13 = arith.constant 13 : index
    %69 = vector.load %arg2[%c0_22, %c13] : memref<8x24xf32, #tpu.memory_space<vmem>>, vector<8x1xf32>
    %c5 = arith.constant 5 : index
    %c0_23 = arith.constant 0 : index
    %70 = vector.load %arg3[%c5, %c0_23] : memref<16x128xf32, #tpu.memory_space<vmem>>, vector<1x128xf32>
    %71 = vector.broadcast %69 : vector<8x1xf32> to vector<8x128xf32>
    %72 = vector.broadcast %70 : vector<1x128xf32> to vector<8x128xf32>
    %73 = arith.subf %71, %72 : vector<8x128xf32>
    %74 = math.absf %73 : vector<8x128xf32>
    %75 = arith.addf %68, %74 : vector<8x128xf32>
    %c0_24 = arith.constant 0 : index
    %c14 = arith.constant 14 : index
    %76 = vector.load %arg2[%c0_24, %c14] : memref<8x24xf32, #tpu.memory_space<vmem>>, vector<8x1xf32>
    %c6 = arith.constant 6 : index
    %c0_25 = arith.constant 0 : index
    %77 = vector.load %arg3[%c6, %c0_25] : memref<16x128xf32, #tpu.memory_space<vmem>>, vector<1x128xf32>
    %78 = vector.broadcast %76 : vector<8x1xf32> to vector<8x128xf32>
    %79 = vector.broadcast %77 : vector<1x128xf32> to vector<8x128xf32>
    %80 = arith.subf %78, %79 : vector<8x128xf32>
    %81 = math.absf %80 : vector<8x128xf32>
    %82 = arith.addf %75, %81 : vector<8x128xf32>
    %c0_26 = arith.constant 0 : index
    %c15 = arith.constant 15 : index
    %83 = vector.load %arg2[%c0_26, %c15] : memref<8x24xf32, #tpu.memory_space<vmem>>, vector<8x1xf32>
    %c7 = arith.constant 7 : index
    %c0_27 = arith.constant 0 : index
    %84 = vector.load %arg3[%c7, %c0_27] : memref<16x128xf32, #tpu.memory_space<vmem>>, vector<1x128xf32>
    %85 = vector.broadcast %83 : vector<8x1xf32> to vector<8x128xf32>
    %86 = vector.broadcast %84 : vector<1x128xf32> to vector<8x128xf32>
    %87 = arith.subf %85, %86 : vector<8x128xf32>
    %88 = math.absf %87 : vector<8x128xf32>
    %89 = arith.addf %82, %88 : vector<8x128xf32>
    %c0_28 = arith.constant 0 : index
    %c16 = arith.constant 16 : index
    %90 = vector.load %arg2[%c0_28, %c16] : memref<8x24xf32, #tpu.memory_space<vmem>>, vector<8x1xf32>
    %c8_29 = arith.constant 8 : index
    %c0_30 = arith.constant 0 : index
    %91 = vector.load %arg3[%c8_29, %c0_30] : memref<16x128xf32, #tpu.memory_space<vmem>>, vector<1x128xf32>
    %92 = vector.broadcast %90 : vector<8x1xf32> to vector<8x128xf32>
    %93 = vector.broadcast %91 : vector<1x128xf32> to vector<8x128xf32>
    %94 = arith.subf %92, %93 : vector<8x128xf32>
    %95 = math.absf %94 : vector<8x128xf32>
    %96 = arith.addf %89, %95 : vector<8x128xf32>
    %c0_31 = arith.constant 0 : index
    %c17 = arith.constant 17 : index
    %97 = vector.load %arg2[%c0_31, %c17] : memref<8x24xf32, #tpu.memory_space<vmem>>, vector<8x1xf32>
    %c9_32 = arith.constant 9 : index
    %c0_33 = arith.constant 0 : index
    %98 = vector.load %arg3[%c9_32, %c0_33] : memref<16x128xf32, #tpu.memory_space<vmem>>, vector<1x128xf32>
    %99 = vector.broadcast %97 : vector<8x1xf32> to vector<8x128xf32>
    %100 = vector.broadcast %98 : vector<1x128xf32> to vector<8x128xf32>
    %101 = arith.subf %99, %100 : vector<8x128xf32>
    %102 = math.absf %101 : vector<8x128xf32>
    %103 = arith.addf %96, %102 : vector<8x128xf32>
    %c0_34 = arith.constant 0 : index
    %c18 = arith.constant 18 : index
    %104 = vector.load %arg2[%c0_34, %c18] : memref<8x24xf32, #tpu.memory_space<vmem>>, vector<8x1xf32>
    %c10_35 = arith.constant 10 : index
    %c0_36 = arith.constant 0 : index
    %105 = vector.load %arg3[%c10_35, %c0_36] : memref<16x128xf32, #tpu.memory_space<vmem>>, vector<1x128xf32>
    %106 = vector.broadcast %104 : vector<8x1xf32> to vector<8x128xf32>
    %107 = vector.broadcast %105 : vector<1x128xf32> to vector<8x128xf32>
    %108 = arith.subf %106, %107 : vector<8x128xf32>
    %109 = math.absf %108 : vector<8x128xf32>
    %110 = arith.addf %103, %109 : vector<8x128xf32>
    %c0_37 = arith.constant 0 : index
    %c19 = arith.constant 19 : index
    %111 = vector.load %arg2[%c0_37, %c19] : memref<8x24xf32, #tpu.memory_space<vmem>>, vector<8x1xf32>
    %c11_38 = arith.constant 11 : index
    %c0_39 = arith.constant 0 : index
    %112 = vector.load %arg3[%c11_38, %c0_39] : memref<16x128xf32, #tpu.memory_space<vmem>>, vector<1x128xf32>
    %113 = vector.broadcast %111 : vector<8x1xf32> to vector<8x128xf32>
    %114 = vector.broadcast %112 : vector<1x128xf32> to vector<8x128xf32>
    %115 = arith.subf %113, %114 : vector<8x128xf32>
    %116 = math.absf %115 : vector<8x128xf32>
    %117 = arith.addf %110, %116 : vector<8x128xf32>
    %c0_40 = arith.constant 0 : index
    %c20 = arith.constant 20 : index
    %118 = vector.load %arg2[%c0_40, %c20] : memref<8x24xf32, #tpu.memory_space<vmem>>, vector<8x1xf32>
    %c12_41 = arith.constant 12 : index
    %c0_42 = arith.constant 0 : index
    %119 = vector.load %arg3[%c12_41, %c0_42] : memref<16x128xf32, #tpu.memory_space<vmem>>, vector<1x128xf32>
    %120 = vector.broadcast %118 : vector<8x1xf32> to vector<8x128xf32>
    %121 = vector.broadcast %119 : vector<1x128xf32> to vector<8x128xf32>
    %122 = arith.subf %120, %121 : vector<8x128xf32>
    %123 = math.absf %122 : vector<8x128xf32>
    %124 = arith.addf %117, %123 : vector<8x128xf32>
    %c0_43 = arith.constant 0 : index
    %c21 = arith.constant 21 : index
    %125 = vector.load %arg2[%c0_43, %c21] : memref<8x24xf32, #tpu.memory_space<vmem>>, vector<8x1xf32>
    %c13_44 = arith.constant 13 : index
    %c0_45 = arith.constant 0 : index
    %126 = vector.load %arg3[%c13_44, %c0_45] : memref<16x128xf32, #tpu.memory_space<vmem>>, vector<1x128xf32>
    %127 = vector.broadcast %125 : vector<8x1xf32> to vector<8x128xf32>
    %128 = vector.broadcast %126 : vector<1x128xf32> to vector<8x128xf32>
    %129 = arith.subf %127, %128 : vector<8x128xf32>
    %130 = math.absf %129 : vector<8x128xf32>
    %131 = arith.addf %124, %130 : vector<8x128xf32>
    %c0_46 = arith.constant 0 : index
    %c22 = arith.constant 22 : index
    %132 = vector.load %arg2[%c0_46, %c22] : memref<8x24xf32, #tpu.memory_space<vmem>>, vector<8x1xf32>
    %c14_47 = arith.constant 14 : index
    %c0_48 = arith.constant 0 : index
    %133 = vector.load %arg3[%c14_47, %c0_48] : memref<16x128xf32, #tpu.memory_space<vmem>>, vector<1x128xf32>
    %134 = vector.broadcast %132 : vector<8x1xf32> to vector<8x128xf32>
    %135 = vector.broadcast %133 : vector<1x128xf32> to vector<8x128xf32>
    %136 = arith.subf %134, %135 : vector<8x128xf32>
    %137 = math.absf %136 : vector<8x128xf32>
    %138 = arith.addf %131, %137 : vector<8x128xf32>
    %c0_49 = arith.constant 0 : index
    %c23 = arith.constant 23 : index
    %139 = vector.load %arg2[%c0_49, %c23] : memref<8x24xf32, #tpu.memory_space<vmem>>, vector<8x1xf32>
    %c15_50 = arith.constant 15 : index
    %c0_51 = arith.constant 0 : index
    %140 = vector.load %arg3[%c15_50, %c0_51] : memref<16x128xf32, #tpu.memory_space<vmem>>, vector<1x128xf32>
    %141 = vector.broadcast %139 : vector<8x1xf32> to vector<8x128xf32>
    %142 = vector.broadcast %140 : vector<1x128xf32> to vector<8x128xf32>
    %143 = arith.subf %141, %142 : vector<8x128xf32>
    %144 = math.absf %143 : vector<8x128xf32>
    %145 = arith.addf %138, %144 : vector<8x128xf32>
    %c0_52 = arith.constant 0 : index
    %c0_53 = arith.constant 0 : index
    %146 = vector.load %arg4[%c0_52, %c0_53] : memref<8x128xf32, #tpu.memory_space<vmem>>, vector<8x128xf32>
    tpu.vector_store %arg4[%c0_52, %c0_53], %145 {strides = array<i32>} : memref<8x128xf32, #tpu.memory_space<vmem>>, vector<8x128xf32>,
    return
  }
  func.func @transform_0(%arg0: i32, %arg1: i32) -> (i32, i32) {
    %c0_i32 = arith.constant 0 : i32
    %c0_i32_0 = arith.constant 0 : i32
    return %arg0, %c0_i32 : i32, i32
  }
  func.func @transform_1(%arg0: i32, %arg1: i32) -> (i32, i32) {
    %c0_i32 = arith.constant 0 : i32
    %c0_i32_0 = arith.constant 0 : i32
    return %c0_i32, %arg1 : i32, i32
  }
  func.func @transform_2(%arg0: i32, %arg1: i32) -> (i32, i32) {
    %c0_i32 = arith.constant 0 : i32
    return %arg0, %arg1 : i32, i32
  }
}

</mosaic_0001>

<llo_original>
// kernel: tpu_custom_call.1
$region0: #{tpu_custom_call.1}
  #allocation0 [shape = 'u32[]', space=smem, size = 0x4, offset = 0x4, fixed_abs, tag = 'smem constant byte address 0x4 - core index']
  #allocation1 [shape = 'u32[72,128]{1,0:T(1,128)}', space=vmem, size = 0x9000, scoped, tag = 'internal scratch']
  %s0 = inlined_call_operand.hbm [shape: f32[16,24], index: 0, kind: input, shape index: {}]
  %s1 = inlined_call_operand.hbm [shape: f32[16,128], index: 1, kind: input, shape index: {}]
  %s2 = inlined_call_operand.hbm [shape: f32[16,128], index: 2, kind: output, shape index: {}]
  %s3 = sld [smem:[#allocation0]]
  $region49: #{tpu_custom_call.1} parent=0
    _
  %s5 = ssub.s32 1, %s3
  %s6 = scalar_select 0, %s5, %s3
  $region1: #{tpu_custom_call.1} parent=0
    #allocation2 [shape = 'u8[8192]{0}', space=vmem, size = 0x2000, scoped, tag = 'input window, operand 0']
    #allocation3 [shape = 's32[2]{0}', space=sflag, size = 0x8, scoped, tag = 'scoped memory for tpu_custom_call.1']
    #allocation4 [shape = 's32[2]{0}', space=sflag, size = 0x8, scoped, tag = 'scoped memory for tpu_custom_call.1']
    #allocation5 [shape = 'u8[8192]{0}', space=vmem, size = 0x2000, scoped, tag = 'input window, operand 1, single buffered']
    #allocation6 [shape = 's32[1]{0}', space=sflag, size = 0x4, scoped, tag = 'scoped memory for tpu_custom_call.1']
    #allocation7 [shape = 'u8[8192]{0}', space=vmem, size = 0x2000, scoped, tag = 'output window, operand 0']
    %7 = vsyncpa [#allocation3], 0
    %s8 = scalar_lea.sflag [#allocation3], 1
    %9 = vsyncpa %s8, 0
    %10 = vsyncpa [#allocation6], 0
    %11 = vsyncpa [#allocation4], 0
    %s12 = scalar_lea.sflag [#allocation4], 1
    %13 = vsyncpa %s12, 0
    loop: start=0, step=1, limit=4
    $region2: #{tpu_custom_call.1} parent=1 // loop_pre_header
      _
    $region3: #{tpu_custom_call.1} parent=1 // loop_header
      %s15 = sphi 0, %s19
      %p16 = scmp.ge.s32.totalorder %s15, 4
      %s22 = sphi 0, %s34
      %s23 = sphi 0, %s30
      %s24 = sphi 0, %s22
      %s25 = sphi 0, %s23
      %s26 = sphi 0, %s24
      %s27 = sphi 0, %s25
      %s37 = sphi 0, %s39
      %s40 = sphi 0, %s37
      %s41 = sphi 0, %s40
      %s57 = sphi 0, %s41
      %s63 = sphi 0, %s65
      %s66 = sphi 0, %s63
      %s67 = sphi 0, %s66
      %s83 = sphi 0, %s67
      %s91 = sphi 0, %s93
      %s94 = sphi 0, %s91
      %s95 = sphi 0, %s94
      %s111 = sphi 0, %s95
    $region4: #{tpu_custom_call.1} parent=1 // loop_header_branch
      %18 = sbr.rel (%p16) target = $region8
    $region5: #{tpu_custom_call.1} parent=1 // loop_body
      %s20 = ssub.s32 %s15, 1
      %s21 = ssub.s32 %s15, 2
      %s28 = sadd.s32 1, %s23
      %p29 = scmp.ge.s32.totalorder %s28, 1
      %s30 = scalar_select %p29, 0, %s28
      %s31 = sadd.s32 1, %s22
      %s32 = scalar_select %p29, %s31, %s22
      %p33 = scmp.ge.s32.totalorder %s32, 2
      %s34 = scalar_select %p33, 0, %s32
      %s35 = ssub.s32 %s22, %s34
      %p36 = scmp.eq.s32.totalorder %s35, 0
      %s38 = sadd.s32 %s37, 1
      %s39 = scalar_select %p36, %s37, %s38
      %p42 = pneg %p36
      %p43 = scmp.eq.s32.totalorder %s15, 1
      %p44 = por %p42, %p43
      %p45 = scmp.ne.s32.totalorder %s37, %s40
      %p46 = scmp.eq.s32.totalorder %s15, 0
      %p47 = por %p45, %p46
      %p48 = scmp.ne.s32.totalorder %s37, %s40
      %p49 = scmp.eq.s32.totalorder %s20, 1
      %p50 = por %p48, %p49
      %p51 = scmp.ne.s32.totalorder %s40, %s41
      %p52 = scmp.eq.s32.totalorder %s20, 0
      %p53 = por %p51, %p52
      %p54 = scmp.ne.s32.totalorder %s40, %s41
      %p55 = scmp.eq.s32.totalorder %s21, 1
      %p56 = por %p54, %p55
      %p58 = scmp.ne.s32.totalorder %s41, %s57
      %p59 = scmp.eq.s32.totalorder %s21, 0
      %p60 = por %p58, %p59
      %s61 = ssub.s32 %s23, %s30
      %p62 = scmp.eq.s32.totalorder %s61, 0
      %s64 = sadd.s32 %s63, 1
      %s65 = scalar_select %p62, %s63, %s64
      %p68 = pneg %p62
      %p69 = scmp.eq.s32.totalorder %s15, 1
      %p70 = por %p68, %p69
      %p71 = scmp.ne.s32.totalorder %s63, %s66
      %p72 = scmp.eq.s32.totalorder %s15, 0
      %p73 = por %p71, %p72
      %p74 = scmp.ne.s32.totalorder %s63, %s66
      %p75 = scmp.eq.s32.totalorder %s20, 1
      %p76 = por %p74, %p75
      %p77 = scmp.ne.s32.totalorder %s66, %s67
      %p78 = scmp.eq.s32.totalorder %s20, 0
      %p79 = por %p77, %p78
      %p80 = scmp.ne.s32.totalorder %s66, %s67
      %p81 = scmp.eq.s32.totalorder %s21, 1
      %p82 = por %p80, %p81
      %p84 = scmp.ne.s32.totalorder %s67, %s83
      %p85 = scmp.eq.s32.totalorder %s21, 0
      %p86 = por %p84, %p85
      %s87 = ssub.s32 %s22, %s34
      %s88 = ssub.s32 %s23, %s30
      %s89 = sor.u32 %s87, %s88
      %p90 = scmp.eq.s32.totalorder %s89, 0
      %s92 = sadd.s32 %s91, 1
      %s93 = scalar_select %p90, %s91, %s92
      %p96 = pneg %p90
      %p97 = scmp.eq.s32.totalorder %s15, 1
      %p98 = por %p96, %p97
      %p99 = scmp.ne.s32.totalorder %s91, %s94
      %p100 = scmp.eq.s32.totalorder %s15, 0
      %p101 = por %p99, %p100
      %p102 = scmp.ne.s32.totalorder %s91, %s94
      %p103 = scmp.eq.s32.totalorder %s20, 1
      %p104 = por %p102, %p103
      %p105 = scmp.ne.s32.totalorder %s94, %s95
      %p106 = scmp.eq.s32.totalorder %s20, 0
      %p107 = por %p105, %p106
      %p108 = scmp.ne.s32.totalorder %s94, %s95
      %p109 = scmp.eq.s32.totalorder %s21, 1
      %p110 = por %p108, %p109
      %p112 = scmp.ne.s32.totalorder %s95, %s111
      %p113 = scmp.eq.s32.totalorder %s21, 0
      %p114 = por %p112, %p113
      %p115 = scmp.le.s32.totalorder 1, %s15
      %p116 = scmp.lt.s32.totalorder %s15, 3
      %p117 = pnand %p115, %p116
      %p118 = pneg %p117
      // Predicated region
      $region9: #{tpu_custom_call.1} parent=5 // pred_check
        _
      $region10: #{tpu_custom_call.1} parent=5 // pred_check_branch
        %120 = sbr.rel (%p117) target = $region12
      $region11: #{tpu_custom_call.1} parent=5 // pred_region
        %s121 = ssub.s32 %s15, 1
        // Predicated region
        $region13: #{tpu_custom_call.1} parent=11 // pred_check
          %p122 = pneg %p79
        $region14: #{tpu_custom_call.1} parent=11 // pred_check_branch
          %124 = sbr.rel (%p122) target = $region16
        $region15: #{tpu_custom_call.1} parent=11 // pred_region
          %126 = vsyncadd [#allocation6], 0
          %s127 = smul.addr %s25, 8
          %s128 = scalar_lea.hbm %s1, %s127
          %s129 = sshll.u32 %s128, 4
          %s130 = int_to_ptr.hbm [resolvable:$true] %s129
          %s131 = sshll.u32 [#allocation5], 4
          %s132 = int_to_ptr.vmem [resolvable:$true] %s131
          %137 = dma.hbm_to_vmem [thread:$0]  %s130, 256, %s132, [#allocation6], 128, 128, 8
        $region16: #{tpu_custom_call.1} parent=11 // pred_fallthru
          _
      $region12: #{tpu_custom_call.1} parent=5 // pred_fallthru
        _
      %p138 = scmp.lt.s32.totalorder %s15, 2
      // Predicated region
      $region17: #{tpu_custom_call.1} parent=5 // pred_check
        %p139 = pneg %p138
      $region18: #{tpu_custom_call.1} parent=5 // pred_check_branch
        %141 = sbr.rel (%p139) target = $region20
      $region19: #{tpu_custom_call.1} parent=5 // pred_region
        // Predicated region
        $region21: #{tpu_custom_call.1} parent=19 // pred_check
          %p142 = pneg %p47
        $region22: #{tpu_custom_call.1} parent=19 // pred_check_branch
          %144 = sbr.rel (%p142) target = $region24
        $region23: #{tpu_custom_call.1} parent=19 // pred_region
          %s145 = sand.u32 %s37, 1
          %s146 = scalar_lea.sflag [#allocation3], %s145
          %s147 = sand.u32 %s37, 1
          %s148 = smul.addr %s147, 8
          %s149 = scalar_lea.vmem [#allocation2], %s148
          %151 = vsyncadd %s146, 0
          %s152 = smul.addr %s22, 8
          %s153 = scalar_lea.hbm %s0, %s152
          %s155 = sshll.u32 %s153, 4
          %s156 = int_to_ptr.hbm [resolvable:$true] %s155
          %s157 = sshll.u32 %s149, 4
          %s158 = int_to_ptr.vmem [resolvable:$true] %s157
          %160 = dma.hbm_to_vmem [thread:$0]  %s156, 128, %s158, %s146
        $region24: #{tpu_custom_call.1} parent=19 // pred_fallthru
          _
      $region20: #{tpu_custom_call.1} parent=5 // pred_fallthru
        _
      %p161 = scmp.le.s32.totalorder 1, %s15
      %p162 = scmp.lt.s32.totalorder %s15, 3
      %p163 = pnand %p161, %p162
      %p164 = pneg %p163
      // Predicated region
      $region25: #{tpu_custom_call.1} parent=5 // pred_check
        _
      $region26: #{tpu_custom_call.1} parent=5 // pred_check_branch
        %166 = sbr.rel (%p163) target = $region28
      $region27: #{tpu_custom_call.1} parent=5 // pred_region
        %s167 = ssub.s32 %s15, 1
        %s168 = sand.u32 %s40, 1
        %s169 = scalar_lea.sflag [#allocation3], %s168
        %s170 = sand.u32 %s40, 1
        %s171 = smul.addr %s170, 8
        %s172 = scalar_lea.vmem [#allocation2], %s171
        // Predicated region
        $region29: #{tpu_custom_call.1} parent=27 // pred_check
          %p173 = pneg %p53
        $region30: #{tpu_custom_call.1} parent=27 // pred_check_branch
          %175 = sbr.rel (%p173) target = $region32
        $region31: #{tpu_custom_call.1} parent=27 // pred_region
          %177 = dma.done %s169, 128
        $region32: #{tpu_custom_call.1} parent=27 // pred_fallthru
          _
        // Predicated region
        $region33: #{tpu_custom_call.1} parent=27 // pred_check
          %p178 = pneg %p79
        $region34: #{tpu_custom_call.1} parent=27 // pred_check_branch
          %180 = sbr.rel (%p178) target = $region36
        $region35: #{tpu_custom_call.1} parent=27 // pred_region
          %182 = dma.done [#allocation6], 256
        $region36: #{tpu_custom_call.1} parent=27 // pred_fallthru
          _
        %s183 = sand.u32 %s40, 1
        %s184 = scalar_lea.sflag [#allocation3], %s183
        %s185 = sand.u32 %s40, 1
        %s186 = smul.addr %s185, 8
        %s187 = scalar_lea.vmem [#allocation2], %s186
        %p188 = pneg %p53
        %p189 = pneg %p50
        %p190 = pneg %p79
        %p191 = pneg %p76
        %p192 = pneg %p107
        %p193 = pneg %p104
        %s194 = sand.u32 %s94, 1
        %s195 = scalar_lea.sflag [#allocation4], %s194
        %s196 = sand.u32 %s94, 1
        %s197 = smul.addr %s196, 8
        %s198 = scalar_lea.vmem [#allocation7], %s197
        %v199 = vld [vmem:[%s172] sm:$0xff]
        %v200 = vxor.u32 %v199, 2147483648
        %v201 = vmul.f32 %v200, 1.442695
        %v202 = vpow.pop %v201
        %v203 = vadd.f32 %v202, 1.0
        %v204 = vrcp.pop %v203
        %v205 = vmul.f32 %v203, %v204
        %v206 = vsub.f32 1.0, %v205
        %v207 = vmul.f32 %v204, %v206
        %v208 = vadd.f32 %v204, %v207
        %vm209 = vweird.f32 %v203
        %vm210 = vweird.f32 %v204
        %vm211 = vmor %vm209, %vm210
        %v212 = vsel %vm211, %v204, %v208
        %v213 = vand.u32 2147483647, %v203
        %vm214 = vcmp.eq.f32.partialorder %v213, 8.507059e+37
        %v215 = vand.u32 %v203, 2147483648
        %v216 = vor.u32 1.1754944e-38, %v215
        %v217 = vsel %vm214, %v216, %v212
        %v218 = vmul.f32 1.0, %v217
        %vm219 = vcmask 64512
        %v220 = vsel %vm219, %v218, 0.0
        %221 = vadd.xlane.f32.xlu0 %v220
        %v222 = vpop.xlane.xlu0 %221
        %v223 = vmul.f32 %v222, 0.125
        %v224 = vsub.f32 1.0, %v223
        %v225 = vmul.f32 %v223, %v223
        %v226 = vmul.f32 %v225, 0.75
        %v227 = vadd.f32 %v224, 1e-08
        %v228 = vlog2.pop %v227
        %v229 = vmul.f32 %v228, 0.6931472
        %v230 = vsub.f32 0.0, %v229
        %v231 = vmul.f32 %v226, %v230
        %v232 = vmul.f32 %v224, %v224
        %v233 = vmul.f32 %v232, 0.25
        %v234 = vadd.f32 %v223, 1e-08
        %v235 = vlog2.pop %v234
        %v236 = vmul.f32 %v235, 0.6931472
        %v237 = vsub.f32 0.0, %v236
        %v238 = vmul.f32 %v233, %v237
        %v239 = vsub.f32 %v238, %v231
        %v240 = vmul.f32 %v239, 2.0
        %v241 = vld [vmem:[#allocation5] sm:$0x1]
        %243 = vset.pattern.permute.xlu0 8
        %244 = vperm.xlu0 %243, %v199
        %v245 = vpop.permute.xlu0 %244
        %v247 = vperm.slane %v241, 0
        %v248 = vsub.f32 %v245, %v247
        %v249 = vand.u32 2147483647, %v248
        %v250 = vadd.f32 %v240, %v249
        %v251 = vld [vmem:[#allocation5 + $0x1] sm:$0x1]
        %252 = vset.pattern.permute.xlu0 9
        %253 = vperm.xlu0 %252, %v199
        %v254 = vpop.permute.xlu0 %253
        %v256 = vperm.slane %v251, 0
        %v257 = vsub.f32 %v254, %v256
        %v258 = vand.u32 2147483647, %v257
        %v259 = vadd.f32 %v250, %v258
        %v260 = vld [vmem:[#allocation5 + $0x2] sm:$0x1]
        %261 = vset.pattern.permute.xlu0 10
        %262 = vperm.xlu0 %261, %v199
        %v263 = vpop.permute.xlu0 %262
        %v265 = vperm.slane %v260, 0
        %v266 = vsub.f32 %v263, %v265
        %v267 = vand.u32 2147483647, %v266
        %v268 = vadd.f32 %v259, %v267
        %v269 = vld [vmem:[#allocation5 + $0x3] sm:$0x1]
        %270 = vset.pattern.permute.xlu0 11
        %271 = vperm.xlu0 %270, %v199
        %v272 = vpop.permute.xlu0 %271
        %v274 = vperm.slane %v269, 0
        %v275 = vsub.f32 %v272, %v274
        %v276 = vand.u32 2147483647, %v275
        %v277 = vadd.f32 %v268, %v276
        %v278 = vld [vmem:[#allocation5 + $0x4] sm:$0x1]
        %279 = vset.pattern.permute.xlu0 12
        %280 = vperm.xlu0 %279, %v199
        %v281 = vpop.permute.xlu0 %280
        %v283 = vperm.slane %v278, 0
        %v284 = vsub.f32 %v281, %v283
        %v285 = vand.u32 2147483647, %v284
        %v286 = vadd.f32 %v277, %v285
        %v287 = vld [vmem:[#allocation5 + $0x5] sm:$0x1]
        %288 = vset.pattern.permute.xlu0 13
        %289 = vperm.xlu0 %288, %v199
        %v290 = vpop.permute.xlu0 %289
        %v292 = vperm.slane %v287, 0
        %v293 = vsub.f32 %v290, %v292
        %v294 = vand.u32 2147483647, %v293
        %v295 = vadd.f32 %v286, %v294
        %v296 = vld [vmem:[#allocation5 + $0x6] sm:$0x1]
        %297 = vset.pattern.permute.xlu0 14
        %298 = vperm.xlu0 %297, %v199
        %v299 = vpop.permute.xlu0 %298
        %v301 = vperm.slane %v296, 0
        %v302 = vsub.f32 %v299, %v301
        %v303 = vand.u32 2147483647, %v302
        %v304 = vadd.f32 %v295, %v303
        %v305 = vld [vmem:[#allocation5 + $0x7] sm:$0x1]
        %306 = vset.pattern.permute.xlu0 15
        %307 = vperm.xlu0 %306, %v199
        %v308 = vpop.permute.xlu0 %307
        %v310 = vperm.slane %v305, 0
        %v311 = vsub.f32 %v308, %v310
        %v312 = vand.u32 2147483647, %v311
        %v313 = vadd.f32 %v304, %v312
        %v314 = vld [vmem:[#allocation5 + $0x8] sm:$0x1]
        %315 = vset.pattern.permute.xlu0 16
        %316 = vperm.xlu0 %315, %v199
        %v317 = vpop.permute.xlu0 %316
        %v319 = vperm.slane %v314, 0
        %v320 = vsub.f32 %v317, %v319
        %v321 = vand.u32 2147483647, %v320
        %v322 = vadd.f32 %v313, %v321
        %v323 = vld [vmem:[#allocation5 + $0x9] sm:$0x1]
        %324 = vset.pattern.permute.xlu0 17
        %325 = vperm.xlu0 %324, %v199
        %v326 = vpop.permute.xlu0 %325
        %v328 = vperm.slane %v323, 0
        %v329 = vsub.f32 %v326, %v328
        %v330 = vand.u32 2147483647, %v329
        %v331 = vadd.f32 %v322, %v330
        %v332 = vld [vmem:[#allocation5 + $0xa] sm:$0x1]
        %333 = vset.pattern.permute.xlu0 18
        %334 = vperm.xlu0 %333, %v199
        %v335 = vpop.permute.xlu0 %334
        %v337 = vperm.slane %v332, 0
        %v338 = vsub.f32 %v335, %v337
        %v339 = vand.u32 2147483647, %v338
        %v340 = vadd.f32 %v331, %v339
        %v341 = vld [vmem:[#allocation5 + $0xb] sm:$0x1]
        %342 = vset.pattern.permute.xlu0 19
        %343 = vperm.xlu0 %342, %v199
        %v344 = vpop.permute.xlu0 %343
        %v346 = vperm.slane %v341, 0
        %v347 = vsub.f32 %v344, %v346
        %v348 = vand.u32 2147483647, %v347
        %v349 = vadd.f32 %v340, %v348
        %v350 = vld [vmem:[#allocation5 + $0xc] sm:$0x1]
        %351 = vset.pattern.permute.xlu0 20
        %352 = vperm.xlu0 %351, %v199
        %v353 = vpop.permute.xlu0 %352
        %v355 = vperm.slane %v350, 0
        %v356 = vsub.f32 %v353, %v355
        %v357 = vand.u32 2147483647, %v356
        %v358 = vadd.f32 %v349, %v357
        %v359 = vld [vmem:[#allocation5 + $0xd] sm:$0x1]
        %360 = vset.pattern.permute.xlu0 21
        %361 = vperm.xlu0 %360, %v199
        %v362 = vpop.permute.xlu0 %361
        %v364 = vperm.slane %v359, 0
        %v365 = vsub.f32 %v362, %v364
        %v366 = vand.u32 2147483647, %v365
        %v367 = vadd.f32 %v358, %v366
        %v368 = vld [vmem:[#allocation5 + $0xe] sm:$0x1]
        %369 = vset.pattern.permute.xlu0 22
        %370 = vperm.xlu0 %369, %v199
        %v371 = vpop.permute.xlu0 %370
        %v373 = vperm.slane %v368, 0
        %v374 = vsub.f32 %v371, %v373
        %v375 = vand.u32 2147483647, %v374
        %v376 = vadd.f32 %v367, %v375
        %v377 = vld [vmem:[#allocation5 + $0xf] sm:$0x1]
        %378 = vset.pattern.permute.xlu0 23
        %379 = vperm.xlu0 %378, %v199
        %v380 = vpop.permute.xlu0 %379
        %v382 = vperm.slane %v377, 0
        %v383 = vsub.f32 %v380, %v382
        %v384 = vand.u32 2147483647, %v383
        %v385 = vadd.f32 %v376, %v384
        %386 = vst [vmem:[%s198] sm:$0xff] %v385
        %s387 = sand.u32 %s94, 1
        %s388 = scalar_lea.sflag [#allocation4], %s387
        %s389 = sand.u32 %s94, 1
        %s390 = smul.addr %s389, 8
        %s391 = scalar_lea.vmem [#allocation7], %s390
        // Predicated region
        $region37: #{tpu_custom_call.1} parent=27 // pred_check
          %p392 = pneg %p104
        $region38: #{tpu_custom_call.1} parent=27 // pred_check_branch
          %394 = sbr.rel (%p392) target = $region40
        $region39: #{tpu_custom_call.1} parent=27 // pred_region
          %396 = vsyncadd %s388, 0
          %s397 = sadd.s32 %s25, %s24
          %s398 = smul.addr %s397, 8
          %s399 = scalar_lea.hbm %s2, %s398
          %s401 = sshll.u32 %s391, 4
          %s402 = int_to_ptr.vmem [resolvable:$true] %s401
          %s403 = sshll.u32 %s399, 4
          %s404 = int_to_ptr.hbm [resolvable:$true] %s403
          %406 = dma.vmem_to_hbm [thread:$0]  %s402, 128, %s404, %s388
        $region40: #{tpu_custom_call.1} parent=27 // pred_fallthru
          _
      $region28: #{tpu_custom_call.1} parent=5 // pred_fallthru
        _
      %p407 = scmp.le.s32.totalorder 2, %s15
      // Predicated region
      $region41: #{tpu_custom_call.1} parent=5 // pred_check
        %p408 = pneg %p407
      $region42: #{tpu_custom_call.1} parent=5 // pred_check_branch
        %410 = sbr.rel (%p408) target = $region44
      $region43: #{tpu_custom_call.1} parent=5 // pred_region
        %s411 = ssub.s32 %s15, 2
        // Predicated region
        $region45: #{tpu_custom_call.1} parent=43 // pred_check
          %p412 = pneg %p110
        $region46: #{tpu_custom_call.1} parent=43 // pred_check_branch
          %414 = sbr.rel (%p412) target = $region48
        $region47: #{tpu_custom_call.1} parent=43 // pred_region
          %s415 = sand.u32 %s95, 1
          %s416 = scalar_lea.sflag [#allocation4], %s415
          %s417 = sand.u32 %s95, 1
          %s418 = smul.addr %s417, 8
          %s419 = scalar_lea.vmem [#allocation7], %s418
          %421 = dma.done %s416, 128
        $region48: #{tpu_custom_call.1} parent=43 // pred_fallthru
          _
      $region44: #{tpu_custom_call.1} parent=5 // pred_fallthru
        _
    $region6: #{tpu_custom_call.1} parent=1 // loop_footer
      %s19 = sadd.s32 1, %s15
    $region7: #{tpu_custom_call.1} parent=1 // loop_footer_branch
      %14 = sbr.rel target = $region3
    $region8: #{tpu_custom_call.1} parent=1 // loop_exit
      _
    %422 = vsyncpa [#allocation3], 1
    %s423 = scalar_lea.sflag [#allocation3], 1
    %424 = vsyncpa %s423, 1
    %425 = vsyncpa [#allocation6], 1
    %426 = vsyncpa [#allocation4], 1
    %s427 = scalar_lea.sflag [#allocation4], 1
    %428 = vsyncpa %s427, 1

</llo_original>
